<compile_context>
chip_gen: v6e
topology: v6e:2x2x1
jax: 0.10.0
libtpu: 0.0.40
codegen_flags: <defaults>
</compile_context>

<pallas_src>
import functools

import jax
import jax.numpy as jnp
from jax import lax
from jax.experimental import pallas as pl
from jax.experimental.pallas import tpu as pltpu


def _round_up(n, m):
    return ((n + m - 1) // m) * m


def _pick_batch_tile(batch):
    """Rows per grid step, sublane (8) aligned.

    * small batches (<=256 rows): one step covering the whole 8-aligned batch;
    * medium batches: two steps so v7x's second TensorCore gets work;
    * large batches: cap at 512 rows (big DMA granules, bounded vreg pressure).
    """
    b8 = _round_up(batch, 8)
    if b8 <= 256:
        return b8
    if b8 <= 1024:
        return _round_up((b8 + 1) // 2, 8)
    return 512


def _lenet_kernel(x_ref, w1_ref, b1_ref, w2_ref, b2_ref, w3_ref, b3_ref,
                  x1_ref, x3_ref, x5_ref, logp_ref, *, num_classes):
    # x/outputs are (TM, *) batch tiles; weights/biases are fully resident
    # padded blocks. Accumulation is always f32 regardless of operand dtype.
    x = x_ref[...]

    # fc1: (TM, Dp) @ (Dp, H1p) + (1, H1p)
    x1 = jnp.dot(x, w1_ref[...], preferred_element_type=jnp.float32) + b1_ref[...]
    x1_ref[...] = x1

    # relu; cast activations to the weight dtype (no-op for f32, bf16 on the
    # v5e fast path) so the MXU sees matched narrow operands.
    x2 = jnp.maximum(x1, 0.0).astype(w2_ref.dtype)

    # fc2: (TM, H1p) @ (H1p, H2p) + (1, H2p)   (padded rows/cols are exact zeros)
    x3 = jnp.dot(x2, w2_ref[...], preferred_element_type=jnp.float32) + b2_ref[...]
    x3_ref[...] = x3

    x4 = jnp.maximum(x3, 0.0).astype(w3_ref.dtype)

    # fc3: (TM, H2p) @ (H2p, Cp) + (1, Cp)  -> padded class columns are exactly 0
    x5 = jnp.dot(x4, w3_ref[...], preferred_element_type=jnp.float32) + b3_ref[...]
    x5_ref[...] = x5

    # log_softmax over the real classes only: mask padded lanes before max/sum so
    # the log-sum-exp is identical to the unpadded computation.
    col = lax.broadcasted_iota(jnp.int32, x5.shape, 1)
    x5m = jnp.where(col < num_classes, x5, jnp.float32(-1e30))
    m = jnp.max(x5m, axis=1, keepdims=True)
    z = x5m - m
    lse = jnp.log(jnp.sum(jnp.exp(z), axis=1, keepdims=True))
    logp_ref[...] = z - lse


def pad_params(params):
    """Pad weights/biases to lane-dense (multiple-of-128) shapes ONCE at init,
    so the per-forward wrapper never touches the weights again."""
    w1, b1, w2, b2, w3, b3 = params        # w: (in, out), b: (1, out)
    D, H1 = w1.shape
    H2 = w2.shape[1]
    C = w3.shape[1]
    Dp, H1p, H2p, Cp = (_round_up(d, 128) for d in (D, H1, H2, C))
    return {
        "w1": jnp.pad(w1, ((0, Dp - D), (0, H1p - H1))),
        "b1": jnp.pad(jnp.reshape(b1, (1, H1)), ((0, 0), (0, H1p - H1))),
        "w2": jnp.pad(w2, ((0, H1p - H1), (0, H2p - H2))),
        "b2": jnp.pad(jnp.reshape(b2, (1, H2)), ((0, 0), (0, H2p - H2))),
        "w3": jnp.pad(w3, ((0, H2p - H2), (0, Cp - C))),
        "b3": jnp.pad(jnp.reshape(b3, (1, C)), ((0, 0), (0, Cp - C))),
        "dims": (D, H1, H2, C),
        "padded_dims": (Dp, H1p, H2p, Cp),
    }


def lenet_300_100_forward(x_nchw, padded_params, *, compute_dtype=jnp.float32,
                          unpad=True):
    """x_nchw: (B, C, H, W). Returns ([x1, x3, x5], log_probs).

    compute_dtype: pass jnp.bfloat16 at large batch on v5e (f32 matmul passes
      would otherwise saturate the MXU slot); accumulation stays f32.
    unpad: True returns exactly the module's shapes (costs one extra HBM pass
      for the slices). For peak throughput pass unpad=False and consume padded
      outputs, ignoring rows >= B and lanes beyond the real widths.
    """
    D, H1, H2, C = padded_params["dims"]
    Dp, H1p, H2p, Cp = padded_params["padded_dims"]

    B = x_nchw.shape[0]
    flat = x_nchw.shape[1] * x_nchw.shape[2] * x_nchw.shape[3]
    assert flat == D, f"input feature size {flat} != fc1 fan-in {D}"

    tm = _pick_batch_tile(B)
    Bp = _round_up(B, tm)

    x_flat = x_nchw.reshape(B, D)            # same memory order as torch .view
    if Bp != B or Dp != D:
        x_flat = jnp.pad(x_flat, ((0, Bp - B), (0, Dp - D)))
    xp = x_flat.astype(compute_dtype)

    # Weights in compute_dtype (bf16 on the v5e fast path); biases stay f32 and
    # are added to the f32 accumulator inside the kernel.
    w1p = padded_params["w1"].astype(compute_dtype)
    w2p = padded_params["w2"].astype(compute_dtype)
    w3p = padded_params["w3"].astype(compute_dtype)
    b1p, b2p, b3p = padded_params["b1"], padded_params["b2"], padded_params["b3"]

    grid = (Bp // tm,)

    row_tiled = lambda cols: pl.BlockSpec((tm, cols), lambda i: (i, 0))
    # Weights/biases are fully resident (same block every grid step). A single
    # buffer would suffice, but the default double-buffer costs < 0.7 MiB —
    # negligible next to the scoped-VMEM budget — so we leave pipelining alone.
    resident = lambda r, c: pl.BlockSpec((r, c), lambda i: (0, 0))

    out_shapes = (
        jax.ShapeDtypeStruct((Bp, H1p), jnp.float32),   # x1 (padded)
        jax.ShapeDtypeStruct((Bp, H2p), jnp.float32),   # x3 (padded)
        jax.ShapeDtypeStruct((Bp, Cp), jnp.float32),    # x5 (padded)
        jax.ShapeDtypeStruct((Bp, Cp), jnp.float32),    # log_softmax (padded)
    )

    kernel = functools.partial(_lenet_kernel, num_classes=C)

    x1p, x3p, x5p, logpp = pl.pallas_call(
        kernel,
        out_shape=out_shapes,
        grid=grid,
        in_specs=[
            row_tiled(Dp),
            resident(Dp, H1p), resident(1, H1p),
            resident(H1p, H2p), resident(1, H2p),
            resident(H2p, Cp), resident(1, Cp),
        ],
        out_specs=[
            row_tiled(H1p),
            row_tiled(H2p),
            row_tiled(Cp),
            row_tiled(Cp),
        ],
        compiler_params=pltpu.CompilerParams(
            dimension_semantics=("parallel",)),
    )(xp, w1p, b1p, w2p, b2p, w3p, b3p)

    if not unpad:
        # Fast path: padded rows of x1/x3/x5 carry propagated biases and padded
        # logp lanes hold ~-1e30; callers must only read [:B] / real widths.
        return [x1p, x3p, x5p], logpp
    return [x1p[:B, :H1], x3p[:B, :H2], x5p[:B, :C]], logpp[:B, :C]


def init_params(key, in_features, num_classes):
    """Deterministic init mirroring nn.Linear default (uniform +- 1/sqrt(fan_in)).
    Weights are stored transposed: (in_features, out_features)."""
    dims = [(in_features, 300), (300, 100), (100, num_classes)]
    params = []
    for (fan_in, fan_out) in dims:
        key, kw, kb = jax.random.split(key, 3)
        bound = 1.0 / jnp.sqrt(jnp.float32(fan_in))
        w = jax.random.uniform(kw, (fan_in, fan_out), jnp.float32, -bound, bound)
        b = jax.random.uniform(kb, (1, fan_out), jnp.float32, -bound, bound)
        params.extend([w, b])
    return tuple(params)


def reference_forward(x_nchw, params):
    B = x_nchw.shape[0]
    x = x_nchw.reshape(B, -1)
    w1, b1, w2, b2, w3, b3 = params
    x1 = x @ w1 + b1
    x3 = jnp.maximum(x1, 0) @ w2 + b2
    x5 = jnp.maximum(x3, 0) @ w3 + b3
    logp = jax.nn.log_softmax(x5, axis=1)
    return [x1, x3, x5], logp


if __name__ == "__main__":
    # Small shapes consistent with the module: batch=2, channel=1, 16x16 input, 10 classes.
    B, C_in, Hh, Ww = 2, 1, 16, 16
    num_classes = 10

    key = jax.random.PRNGKey(0)
    key, kx = jax.random.split(key)
    x = jax.random.normal(kx, (B, C_in, Hh, Ww), jnp.float32)

    params = init_params(key, C_in * Hh * Ww, num_classes)
    pparams = pad_params(params)          # padded once, reused across calls

    fmaps, logp = lenet_300_100_forward(x, pparams)
    jax.block_until_ready(logp)
    for f in fmaps:
        jax.block_until_ready(f)

    ref_fmaps, ref_logp = reference_forward(x, params)
    for a, b in zip(fmaps, ref_fmaps):
        assert a.shape == b.shape, "feature map shape mismatch"
        assert jnp.allclose(a, b, atol=1e-4, rtol=1e-4), "feature map mismatch"
    assert jnp.allclose(logp, ref_logp, atol=1e-4, rtol=1e-4), "log_softmax mismatch"

    # Second check: a batch large enough to exercise batch padding, the bigger
    # tiles, and a 2-step grid (v7x megacore sharding of the batch axis).
    B2 = 300
    key, kx2 = jax.random.split(key)
    x2 = jax.random.normal(kx2, (B2, C_in, Hh, Ww), jnp.float32)
    fmaps2, logp2 = lenet_300_100_forward(x2, pparams)
    jax.block_until_ready(logp2)
    ref_fmaps2, ref_logp2 = reference_forward(x2, params)
    for a, b in zip(fmaps2, ref_fmaps2):
        assert a.shape == b.shape, "feature map shape mismatch (B=300)"
        assert jnp.allclose(a, b, atol=1e-3, rtol=1e-3), "feature map mismatch (B=300)"
    assert jnp.allclose(logp2, ref_logp2, atol=1e-3, rtol=1e-3), "log_softmax mismatch (B=300)"

    print("KERNEL_OK")
</pallas_src>

<mosaic_0001>
module attributes {stable_mosaic.version = 11 : i64} {
  func.func @_lenet_kernel(%arg0: i32, %arg1: memref<8x256xf32, #tpu.memory_space<vmem>>, %arg2: memref<256x384xf32, #tpu.memory_space<vmem>>, %arg3: memref<1x384xf32, #tpu.memory_space<vmem>>, %arg4: memref<384x128xf32, #tpu.memory_space<vmem>>, %arg5: memref<1x128xf32, #tpu.memory_space<vmem>>, %arg6: memref<128x128xf32, #tpu.memory_space<vmem>>, %arg7: memref<1x128xf32, #tpu.memory_space<vmem>>, %arg8: memref<8x384xf32, #tpu.memory_space<vmem>>, %arg9: memref<8x128xf32, #tpu.memory_space<vmem>>, %arg10: memref<8x128xf32, #tpu.memory_space<vmem>>, %arg11: memref<8x128xf32, #tpu.memory_space<vmem>>) attributes {dimension_semantics = [#tpu.dimension_semantics<parallel>], iteration_bounds = array<i64: 1>, scalar_prefetch = 0 : i64, scratch_operands = 0 : i64, tpu.core_type = #tpu.core_type<tc>, window_params = [{transform_indices = @transform_0, window_bounds = array<i64: 8, 256>}, {pipeline_mode = #tpu.pipeline_mode<synchronous>, transform_indices = @transform_1, window_bounds = array<i64: 256, 384>}, {pipeline_mode = #tpu.pipeline_mode<synchronous>, transform_indices = @transform_2, window_bounds = array<i64: 1, 384>}, {pipeline_mode = #tpu.pipeline_mode<synchronous>, transform_indices = @transform_3, window_bounds = array<i64: 384, 128>}, {pipeline_mode = #tpu.pipeline_mode<synchronous>, transform_indices = @transform_4, window_bounds = array<i64: 1, 128>}, {pipeline_mode = #tpu.pipeline_mode<synchronous>, transform_indices = @transform_5, window_bounds = array<i64: 128, 128>}, {pipeline_mode = #tpu.pipeline_mode<synchronous>, transform_indices = @transform_6, window_bounds = array<i64: 1, 128>}, {transform_indices = @transform_7, window_bounds = array<i64: 8, 384>}, {transform_indices = @transform_8, window_bounds = array<i64: 8, 128>}, {transform_indices = @transform_9, window_bounds = array<i64: 8, 128>}, {transform_indices = @transform_10, window_bounds = array<i64: 8, 128>}]} {
    %c0 = arith.constant 0 : index
    %c0_0 = arith.constant 0 : index
    %0 = vector.load %arg1[%c0, %c0_0] : memref<8x256xf32, #tpu.memory_space<vmem>>, vector<8x256xf32>
    %c0_1 = arith.constant 0 : index
    %c0_2 = arith.constant 0 : index
    %1 = vector.load %arg2[%c0_1, %c0_2] : memref<256x384xf32, #tpu.memory_space<vmem>>, vector<256x384xf32>
    %cst = arith.constant dense<0.000000e+00> : vector<8x384xf32>
    %2 = tpu.matmul %0, %1, %cst {dimension_numbers = #tpu.dot_dimension_numbers<[1], [0], [0], [1], [0, 0, 1, 1], [], []>} : vector<8x256xf32>, vector<256x384xf32>, vector<8x384xf32> -> vector<8x384xf32>
    %c0_3 = arith.constant 0 : index
    %c0_4 = arith.constant 0 : index
    %3 = vector.load %arg3[%c0_3, %c0_4] : memref<1x384xf32, #tpu.memory_space<vmem>>, vector<1x384xf32>
    %4 = vector.broadcast %3 : vector<1x384xf32> to vector<8x384xf32>
    %5 = arith.addf %2, %4 : vector<8x384xf32>
    %c0_5 = arith.constant 0 : index
    %c0_6 = arith.constant 0 : index
    %6 = vector.load %arg8[%c0_5, %c0_6] : memref<8x384xf32, #tpu.memory_space<vmem>>, vector<8x384xf32>
    tpu.vector_store %arg8[%c0_5, %c0_6], %5 {strides = array<i32>} : memref<8x384xf32, #tpu.memory_space<vmem>>, vector<8x384xf32>,
    %cst_7 = arith.constant 0.000000e+00 : f32
    %7 = vector.broadcast %cst_7 : f32 to vector<8x384xf32>
    %8 = arith.maximumf %5, %7 : vector<8x384xf32>
    %c0_8 = arith.constant 0 : index
    %c0_9 = arith.constant 0 : index
    %9 = vector.load %arg4[%c0_8, %c0_9] : memref<384x128xf32, #tpu.memory_space<vmem>>, vector<384x128xf32>
    %cst_10 = arith.constant dense<0.000000e+00> : vector<8x128xf32>
    %10 = tpu.matmul %8, %9, %cst_10 {dimension_numbers = #tpu.dot_dimension_numbers<[1], [0], [0], [1], [0, 0, 1, 1], [], []>} : vector<8x384xf32>, vector<384x128xf32>, vector<8x128xf32> -> vector<8x128xf32>
    %c0_11 = arith.constant 0 : index
    %c0_12 = arith.constant 0 : index
    %11 = vector.load %arg5[%c0_11, %c0_12] : memref<1x128xf32, #tpu.memory_space<vmem>>, vector<1x128xf32>
    %12 = vector.broadcast %11 : vector<1x128xf32> to vector<8x128xf32>
    %13 = arith.addf %10, %12 : vector<8x128xf32>
    %c0_13 = arith.constant 0 : index
    %c0_14 = arith.constant 0 : index
    %14 = vector.load %arg9[%c0_13, %c0_14] : memref<8x128xf32, #tpu.memory_space<vmem>>, vector<8x128xf32>
    tpu.vector_store %arg9[%c0_13, %c0_14], %13 {strides = array<i32>} : memref<8x128xf32, #tpu.memory_space<vmem>>, vector<8x128xf32>,
    %cst_15 = arith.constant 0.000000e+00 : f32
    %15 = vector.broadcast %cst_15 : f32 to vector<8x128xf32>
    %16 = arith.maximumf %13, %15 : vector<8x128xf32>
    %c0_16 = arith.constant 0 : index
    %c0_17 = arith.constant 0 : index
    %17 = vector.load %arg6[%c0_16, %c0_17] : memref<128x128xf32, #tpu.memory_space<vmem>>, vector<128x128xf32>
    %cst_18 = arith.constant dense<0.000000e+00> : vector<8x128xf32>
    %18 = tpu.matmul %16, %17, %cst_18 {dimension_numbers = #tpu.dot_dimension_numbers<[1], [0], [0], [1], [0, 0, 1, 1], [], []>} : vector<8x128xf32>, vector<128x128xf32>, vector<8x128xf32> -> vector<8x128xf32>
    %c0_19 = arith.constant 0 : index
    %c0_20 = arith.constant 0 : index
    %19 = vector.load %arg7[%c0_19, %c0_20] : memref<1x128xf32, #tpu.memory_space<vmem>>, vector<1x128xf32>
    %20 = vector.broadcast %19 : vector<1x128xf32> to vector<8x128xf32>
    %21 = arith.addf %18, %20 : vector<8x128xf32>
    %c0_21 = arith.constant 0 : index
    %c0_22 = arith.constant 0 : index
    %22 = vector.load %arg10[%c0_21, %c0_22] : memref<8x128xf32, #tpu.memory_space<vmem>>, vector<8x128xf32>
    tpu.vector_store %arg10[%c0_21, %c0_22], %21 {strides = array<i32>} : memref<8x128xf32, #tpu.memory_space<vmem>>, vector<8x128xf32>,
    %23 = tpu.iota {dimensions = array<i32: 1>} : vector<8x128xi32>
    %c10_i32 = arith.constant 10 : i32
    %24 = vector.broadcast %c10_i32 : i32 to vector<8x128xi32>
    %25 = arith.cmpi slt, %23, %24 : vector<8x128xi32>
    %cst_23 = arith.constant -1.000000e+30 : f32
    %26 = vector.broadcast %cst_23 : f32 to vector<8x128xf32>
    %27 = arith.select %25, %21, %26 : vector<8x128xi1>, vector<8x128xf32>
    %cst_24 = arith.constant dense<0xFF800000> : vector<8xf32>
    %28 = vector.multi_reduction <maximumf>, %27, %cst_24 [1] : vector<8x128xf32> to vector<8xf32>
    %29 = vector.shape_cast %28 : vector<8xf32> to vector<8x1xf32>
    %30 = vector.broadcast %29 : vector<8x1xf32> to vector<8x128xf32>
    %31 = arith.subf %27, %30 : vector<8x128xf32>
    %32 = math.exp %31 : vector<8x128xf32>
    %cst_25 = arith.constant dense<0.000000e+00> : vector<8xf32>
    %33 = vector.multi_reduction <add>, %32, %cst_25 [1] : vector<8x128xf32> to vector<8xf32>
    %34 = vector.shape_cast %33 : vector<8xf32> to vector<8x1xf32>
    %35 = math.log %34 : vector<8x1xf32>
    %36 = vector.broadcast %35 : vector<8x1xf32> to vector<8x128xf32>
    %37 = arith.subf %31, %36 : vector<8x128xf32>
    %c0_26 = arith.constant 0 : index
    %c0_27 = arith.constant 0 : index
    %38 = vector.load %arg11[%c0_26, %c0_27] : memref<8x128xf32, #tpu.memory_space<vmem>>, vector<8x128xf32>
    tpu.vector_store %arg11[%c0_26, %c0_27], %37 {strides = array<i32>} : memref<8x128xf32, #tpu.memory_space<vmem>>, vector<8x128xf32>,
    return
  }
  func.func @transform_0(%arg0: i32) -> (i32, i32) {
    %c0_i32 = arith.constant 0 : i32
    %c0_i32_0 = arith.constant 0 : i32
    return %arg0, %c0_i32 : i32, i32
  }
  func.func @transform_1(%arg0: i32) -> (i32, i32) {
    %c0_i32 = arith.constant 0 : i32
    %c0_i32_0 = arith.constant 0 : i32
    %c0_i32_1 = arith.constant 0 : i32
    return %c0_i32, %c0_i32_0 : i32, i32
  }
  func.func @transform_2(%arg0: i32) -> (i32, i32) {
    %c0_i32 = arith.constant 0 : i32
    %c0_i32_0 = arith.constant 0 : i32
    %c0_i32_1 = arith.constant 0 : i32
    return %c0_i32, %c0_i32_0 : i32, i32
  }
  func.func @transform_3(%arg0: i32) -> (i32, i32) {
    %c0_i32 = arith.constant 0 : i32
    %c0_i32_0 = arith.constant 0 : i32
    %c0_i32_1 = arith.constant 0 : i32
    return %c0_i32, %c0_i32_0 : i32, i32
  }
  func.func @transform_4(%arg0: i32) -> (i32, i32) {
    %c0_i32 = arith.constant 0 : i32
    %c0_i32_0 = arith.constant 0 : i32
    %c0_i32_1 = arith.constant 0 : i32
    return %c0_i32, %c0_i32_0 : i32, i32
  }
  func.func @transform_5(%arg0: i32) -> (i32, i32) {
    %c0_i32 = arith.constant 0 : i32
    %c0_i32_0 = arith.constant 0 : i32
    %c0_i32_1 = arith.constant 0 : i32
    return %c0_i32, %c0_i32_0 : i32, i32
  }
  func.func @transform_6(%arg0: i32) -> (i32, i32) {
    %c0_i32 = arith.constant 0 : i32
    %c0_i32_0 = arith.constant 0 : i32
    %c0_i32_1 = arith.constant 0 : i32
    return %c0_i32, %c0_i32_0 : i32, i32
  }
  func.func @transform_7(%arg0: i32) -> (i32, i32) {
    %c0_i32 = arith.constant 0 : i32
    %c0_i32_0 = arith.constant 0 : i32
    return %arg0, %c0_i32 : i32, i32
  }
  func.func @transform_8(%arg0: i32) -> (i32, i32) {
    %c0_i32 = arith.constant 0 : i32
    %c0_i32_0 = arith.constant 0 : i32
    return %arg0, %c0_i32 : i32, i32
  }
  func.func @transform_9(%arg0: i32) -> (i32, i32) {
    %c0_i32 = arith.constant 0 : i32
    %c0_i32_0 = arith.constant 0 : i32
    return %arg0, %c0_i32 : i32, i32
  }
  func.func @transform_10(%arg0: i32) -> (i32, i32) {
    %c0_i32 = arith.constant 0 : i32
    %c0_i32_0 = arith.constant 0 : i32
    return %arg0, %c0_i32 : i32, i32
  }
}

</mosaic_0001>

<llo_original>
// kernel: tpu_custom_call.1
$region0: #{tpu_custom_call.1}
  #allocation0 [shape = 'u32[]', space=smem, size = 0x4, offset = 0x4, fixed_abs, tag = 'smem constant byte address 0x4 - core index']
  #allocation1 [shape = 'u32[144,128]{1,0:T(1,128)}', space=vmem, size = 0x12000, scoped, tag = 'internal scratch']
  %s0 = inlined_call_operand.hbm [shape: f32[8,256], index: 0, kind: input, shape index: {}]
  %s1 = inlined_call_operand.hbm [shape: f32[256,384], index: 1, kind: input, shape index: {}]
  %s2 = inlined_call_operand.vmem [shape: f32[1,384], index: 2, kind: input, shape index: {}]
  %s3 = inlined_call_operand.hbm [shape: f32[384,128], index: 3, kind: input, shape index: {}]
  %s4 = inlined_call_operand.vmem [shape: f32[1,128], index: 4, kind: input, shape index: {}]
  %s5 = inlined_call_operand.hbm [shape: f32[128,128], index: 5, kind: input, shape index: {}]
  %s6 = inlined_call_operand.vmem [shape: f32[1,128], index: 6, kind: input, shape index: {}]
  %s7 = inlined_call_operand.hbm [shape: f32[8,384], index: 7, kind: output, shape index: {0}]
  %s8 = inlined_call_operand.hbm [shape: f32[8,128], index: 8, kind: output, shape index: {1}]
  %s9 = inlined_call_operand.hbm [shape: f32[8,128], index: 9, kind: output, shape index: {2}]
  %s10 = inlined_call_operand.hbm [shape: f32[8,128], index: 10, kind: output, shape index: {3}]
  %11 = xla_tuple %s7, %s8, %s9, %s10
  %s12 = sld [smem:[#allocation0]]
  $region78: #{tpu_custom_call.1} parent=0
    _
  %s14 = ssub.s32 1, %s12
  %s15 = scalar_select 0, %s14, %s12
  $region1: #{tpu_custom_call.1} parent=0
    #allocation2 [shape = 'u8[8192]{0}', space=vmem, size = 0x2000, scoped, tag = 'input window, operand 0, single buffered']
    #allocation3 [shape = 's32[1]{0}', space=sflag, size = 0x4, scoped, tag = 'scoped memory for tpu_custom_call.1']
    #allocation4 [shape = 's32[1]{0}', space=sflag, size = 0x4, scoped, tag = 'scoped memory for tpu_custom_call.1']
    #allocation5 [shape = 'u8[393216]{0}', space=vmem, size = 0x60000, scoped, tag = 'input window, operand 1, single buffered']
    #allocation6 [shape = 's32[1]{0}', space=sflag, size = 0x4, scoped, tag = 'scoped memory for tpu_custom_call.1']
    #allocation7 [shape = 'u8[196608]{0}', space=vmem, size = 0x30000, scoped, tag = 'input window, operand 3, single buffered']
    #allocation8 [shape = 'u8[65536]{0}', space=vmem, size = 0x10000, scoped, tag = 'input window, operand 5, single buffered']
    #allocation9 [shape = 's32[1]{0}', space=sflag, size = 0x4, scoped, tag = 'scoped memory for tpu_custom_call.1']
    #allocation10 [shape = 'u8[12288]{0}', space=vmem, size = 0x3000, scoped, tag = 'output window, operand 0, single buffered']
    #allocation11 [shape = 'u8[4096]{0}', space=vmem, size = 0x1000, scoped, tag = 'output window, operand 1, single buffered']
    #allocation12 [shape = 's32[1]{0}', space=sflag, size = 0x4, scoped, tag = 'scoped memory for tpu_custom_call.1']
    #allocation13 [shape = 'u8[4096]{0}', space=vmem, size = 0x1000, scoped, tag = 'output window, operand 2, single buffered']
    #allocation14 [shape = 'u8[4096]{0}', space=vmem, size = 0x1000, scoped, tag = 'output window, operand 3, single buffered']
    #allocation15 [shape = 's32[1]{0}', space=sflag, size = 0x4, scoped, tag = 'scoped memory for tpu_custom_call.1']
    %16 = vsyncpa [#allocation3], 0
    %17 = vsyncpa [#allocation6], 0
    %18 = vsyncpa [#allocation9], 0
    %19 = vsyncpa [#allocation4], 0
    %20 = vsyncpa [#allocation12], 0
    %21 = vsyncpa [#allocation15], 0
    // Predicated region
    $region2: #{tpu_custom_call.1} parent=1 // pred_check
      _
    $region3: #{tpu_custom_call.1} parent=1 // pred_check_branch
      %23 = sbr.rel (0) target = $region5
    $region4: #{tpu_custom_call.1} parent=1 // pred_region
      %s25 = ssub.s32 256, 256
      %26 = vsyncadd [#allocation3], %s25
      %s28 = sshll.u32 [#allocation2], 4
      %s29 = int_to_ptr.vmem [resolvable:$true] %s28
      %31 = dma.hbm_to_vmem [thread:$0]  %s0, 256, %s29, [#allocation3]
    $region5: #{tpu_custom_call.1} parent=1 // pred_fallthru
      _
    // Predicated region
    $region6: #{tpu_custom_call.1} parent=1 // pred_check
      _
    $region7: #{tpu_custom_call.1} parent=1 // pred_check_branch
      %33 = sbr.rel (0) target = $region9
    $region8: #{tpu_custom_call.1} parent=1 // pred_region
      %s35 = ssub.s32 12288, 12288
      %36 = vsyncadd [#allocation6], %s35
      %s37 = sshll.u32 [#allocation5], 4
      %s38 = int_to_ptr.vmem [resolvable:$true] %s37
      %43 = dma.hbm_to_vmem [thread:$0]  %s1, 12288, %s38, [#allocation6], 384, 384, 24
    $region9: #{tpu_custom_call.1} parent=1 // pred_fallthru
      _
    // Predicated region
    $region10: #{tpu_custom_call.1} parent=1 // pred_check
      _
    $region11: #{tpu_custom_call.1} parent=1 // pred_check_branch
      %45 = sbr.rel (0) target = $region13
    $region12: #{tpu_custom_call.1} parent=1 // pred_region
      _
    $region13: #{tpu_custom_call.1} parent=1 // pred_fallthru
      _
    // Predicated region
    $region14: #{tpu_custom_call.1} parent=1 // pred_check
      _
    $region15: #{tpu_custom_call.1} parent=1 // pred_check_branch
      %47 = sbr.rel (0) target = $region17
    $region16: #{tpu_custom_call.1} parent=1 // pred_region
      %s49 = ssub.s32 6144, 6144
      %50 = vsyncadd [#allocation6], %s49
      %s51 = sshll.u32 [#allocation7], 4
      %s52 = int_to_ptr.vmem [resolvable:$true] %s51
      %57 = dma.hbm_to_vmem [thread:$0]  %s3, 6144, %s52, [#allocation6], 128, 128, 8
    $region17: #{tpu_custom_call.1} parent=1 // pred_fallthru
      _
    // Predicated region
    $region18: #{tpu_custom_call.1} parent=1 // pred_check
      _
    $region19: #{tpu_custom_call.1} parent=1 // pred_check_branch
      %59 = sbr.rel (0) target = $region21
    $region20: #{tpu_custom_call.1} parent=1 // pred_region
      _
    $region21: #{tpu_custom_call.1} parent=1 // pred_fallthru
      _
    // Predicated region
    $region22: #{tpu_custom_call.1} parent=1 // pred_check
      _
    $region23: #{tpu_custom_call.1} parent=1 // pred_check_branch
      %61 = sbr.rel (0) target = $region25
    $region24: #{tpu_custom_call.1} parent=1 // pred_region
      %s63 = ssub.s32 2048, 2048
      %64 = vsyncadd [#allocation9], %s63
      %s65 = sshll.u32 [#allocation8], 4
      %s66 = int_to_ptr.vmem [resolvable:$true] %s65
      %71 = dma.hbm_to_vmem [thread:$0]  %s5, 2048, %s66, [#allocation9], 128, 128, 8
    $region25: #{tpu_custom_call.1} parent=1 // pred_fallthru
      _
    // Predicated region
    $region26: #{tpu_custom_call.1} parent=1 // pred_check
      _
    $region27: #{tpu_custom_call.1} parent=1 // pred_check_branch
      %73 = sbr.rel (0) target = $region29
    $region28: #{tpu_custom_call.1} parent=1 // pred_region
      _
    $region29: #{tpu_custom_call.1} parent=1 // pred_fallthru
      _
    // Predicated region
    $region30: #{tpu_custom_call.1} parent=1 // pred_check
      _
    $region31: #{tpu_custom_call.1} parent=1 // pred_check_branch
      %75 = sbr.rel (0) target = $region33
    $region32: #{tpu_custom_call.1} parent=1 // pred_region
      %76 = dma.done [#allocation3], 256
    $region33: #{tpu_custom_call.1} parent=1 // pred_fallthru
      _
    // Predicated region
    $region34: #{tpu_custom_call.1} parent=1 // pred_check
      _
    $region35: #{tpu_custom_call.1} parent=1 // pred_check_branch
      %78 = sbr.rel (0) target = $region37
    $region36: #{tpu_custom_call.1} parent=1 // pred_region
      %79 = dma.done [#allocation6], 12288
    $region37: #{tpu_custom_call.1} parent=1 // pred_fallthru
      _
    // Predicated region
    $region38: #{tpu_custom_call.1} parent=1 // pred_check
      _
    $region39: #{tpu_custom_call.1} parent=1 // pred_check_branch
      %81 = sbr.rel (0) target = $region41
    $region40: #{tpu_custom_call.1} parent=1 // pred_region
      %82 = dma.done [#allocation6], 6144
    $region41: #{tpu_custom_call.1} parent=1 // pred_fallthru
      _
    // Predicated region
    $region42: #{tpu_custom_call.1} parent=1 // pred_check
      _
    $region43: #{tpu_custom_call.1} parent=1 // pred_check_branch
      %84 = sbr.rel (0) target = $region45
    $region44: #{tpu_custom_call.1} parent=1 // pred_region
      %85 = dma.done [#allocation9], 2048
    $region45: #{tpu_custom_call.1} parent=1 // pred_fallthru
      _
    %v86 = vld [vmem:[#allocation2] sm:$0xff]
    %v87 = vld [vmem:[#allocation2 + $0x8] sm:$0xff]
    %v88 = vld [vmem:[#allocation5] sm:$0xff]
    %v89 = vld [vmem:[#allocation5 + $0x8] sm:$0xff]
    %v90 = vld [vmem:[#allocation5 + $0x10] sm:$0xff]
    %v91 = vld [vmem:[#allocation5 + $0x18] sm:$0xff]
    %v92 = vld [vmem:[#allocation5 + $0x20] sm:$0xff]
    %v93 = vld [vmem:[#allocation5 + $0x28] sm:$0xff]
    %v94 = vld [vmem:[#allocation5 + $0x30] sm:$0xff]
    %v95 = vld [vmem:[#allocation5 + $0x38] sm:$0xff]
    %v96 = vld [vmem:[#allocation5 + $0x40] sm:$0xff]
    %v97 = vld [vmem:[#allocation5 + $0x48] sm:$0xff]
    %v98 = vld [vmem:[#allocation5 + $0x50] sm:$0xff]
    %v99 = vld [vmem:[#allocation5 + $0x58] sm:$0xff]
    %v100 = vld [vmem:[#allocation5 + $0x60] sm:$0xff]
    %v101 = vld [vmem:[#allocation5 + $0x68] sm:$0xff]
    %v102 = vld [vmem:[#allocation5 + $0x70] sm:$0xff]
    %v103 = vld [vmem:[#allocation5 + $0x78] sm:$0xff]
    %v104 = vld [vmem:[#allocation5 + $0x80] sm:$0xff]
    %v105 = vld [vmem:[#allocation5 + $0x88] sm:$0xff]
    %v106 = vld [vmem:[#allocation5 + $0x90] sm:$0xff]
    %v107 = vld [vmem:[#allocation5 + $0x98] sm:$0xff]
    %v108 = vld [vmem:[#allocation5 + $0xa0] sm:$0xff]
    %v109 = vld [vmem:[#allocation5 + $0xa8] sm:$0xff]
    %v110 = vld [vmem:[#allocation5 + $0xb0] sm:$0xff]
    %v111 = vld [vmem:[#allocation5 + $0xb8] sm:$0xff]
    %v112 = vld [vmem:[#allocation5 + $0xc0] sm:$0xff]
    %v113 = vld [vmem:[#allocation5 + $0xc8] sm:$0xff]
    %v114 = vld [vmem:[#allocation5 + $0xd0] sm:$0xff]
    %v115 = vld [vmem:[#allocation5 + $0xd8] sm:$0xff]
    %v116 = vld [vmem:[#allocation5 + $0xe0] sm:$0xff]
    %v117 = vld [vmem:[#allocation5 + $0xe8] sm:$0xff]
    %v118 = vld [vmem:[#allocation5 + $0xf0] sm:$0xff]
    %v119 = vld [vmem:[#allocation5 + $0xf8] sm:$0xff]
    %v120 = vld [vmem:[#allocation5 + $0x100] sm:$0xff]
    %v121 = vld [vmem:[#allocation5 + $0x108] sm:$0xff]
    %v122 = vld [vmem:[#allocation5 + $0x110] sm:$0xff]
    %v123 = vld [vmem:[#allocation5 + $0x118] sm:$0xff]
    %v124 = vld [vmem:[#allocation5 + $0x120] sm:$0xff]
    %v125 = vld [vmem:[#allocation5 + $0x128] sm:$0xff]
    %v126 = vld [vmem:[#allocation5 + $0x130] sm:$0xff]
    %v127 = vld [vmem:[#allocation5 + $0x138] sm:$0xff]
    %v128 = vld [vmem:[#allocation5 + $0x140] sm:$0xff]
    %v129 = vld [vmem:[#allocation5 + $0x148] sm:$0xff]
    %v130 = vld [vmem:[#allocation5 + $0x150] sm:$0xff]
    %v131 = vld [vmem:[#allocation5 + $0x158] sm:$0xff]
    %v132 = vld [vmem:[#allocation5 + $0x160] sm:$0xff]
    %v133 = vld [vmem:[#allocation5 + $0x168] sm:$0xff]
    %v134 = vld [vmem:[#allocation5 + $0x170] sm:$0xff]
    %v135 = vld [vmem:[#allocation5 + $0x178] sm:$0xff]
    %v136 = vld [vmem:[#allocation5 + $0x180] sm:$0xff]
    %v137 = vld [vmem:[#allocation5 + $0x188] sm:$0xff]
    %v138 = vld [vmem:[#allocation5 + $0x190] sm:$0xff]
    %v139 = vld [vmem:[#allocation5 + $0x198] sm:$0xff]
    %v140 = vld [vmem:[#allocation5 + $0x1a0] sm:$0xff]
    %v141 = vld [vmem:[#allocation5 + $0x1a8] sm:$0xff]
    %v142 = vld [vmem:[#allocation5 + $0x1b0] sm:$0xff]
    %v143 = vld [vmem:[#allocation5 + $0x1b8] sm:$0xff]
    %v144 = vld [vmem:[#allocation5 + $0x1c0] sm:$0xff]
    %v145 = vld [vmem:[#allocation5 + $0x1c8] sm:$0xff]
    %v146 = vld [vmem:[#allocation5 + $0x1d0] sm:$0xff]
    %v147 = vld [vmem:[#allocation5 + $0x1d8] sm:$0xff]
    %v148 = vld [vmem:[#allocation5 + $0x1e0] sm:$0xff]
    %v149 = vld [vmem:[#allocation5 + $0x1e8] sm:$0xff]
    %v150 = vld [vmem:[#allocation5 + $0x1f0] sm:$0xff]
    %v151 = vld [vmem:[#allocation5 + $0x1f8] sm:$0xff]
    %v152 = vld [vmem:[#allocation5 + $0x200] sm:$0xff]
    %v153 = vld [vmem:[#allocation5 + $0x208] sm:$0xff]
    %v154 = vld [vmem:[#allocation5 + $0x210] sm:$0xff]
    %v155 = vld [vmem:[#allocation5 + $0x218] sm:$0xff]
    %v156 = vld [vmem:[#allocation5 + $0x220] sm:$0xff]
    %v157 = vld [vmem:[#allocation5 + $0x228] sm:$0xff]
    %v158 = vld [vmem:[#allocation5 + $0x230] sm:$0xff]
    %v159 = vld [vmem:[#allocation5 + $0x238] sm:$0xff]
    %v160 = vld [vmem:[#allocation5 + $0x240] sm:$0xff]
    %v161 = vld [vmem:[#allocation5 + $0x248] sm:$0xff]
    %v162 = vld [vmem:[#allocation5 + $0x250] sm:$0xff]
    %v163 = vld [vmem:[#allocation5 + $0x258] sm:$0xff]
    %v164 = vld [vmem:[#allocation5 + $0x260] sm:$0xff]
    %v165 = vld [vmem:[#allocation5 + $0x268] sm:$0xff]
    %v166 = vld [vmem:[#allocation5 + $0x270] sm:$0xff]
    %v167 = vld [vmem:[#allocation5 + $0x278] sm:$0xff]
    %v168 = vld [vmem:[#allocation5 + $0x280] sm:$0xff]
    %v169 = vld [vmem:[#allocation5 + $0x288] sm:$0xff]
    %v170 = vld [vmem:[#allocation5 + $0x290] sm:$0xff]
    %v171 = vld [vmem:[#allocation5 + $0x298] sm:$0xff]
    %v172 = vld [vmem:[#allocation5 + $0x2a0] sm:$0xff]
    %v173 = vld [vmem:[#allocation5 + $0x2a8] sm:$0xff]
    %v174 = vld [vmem:[#allocation5 + $0x2b0] sm:$0xff]
    %v175 = vld [vmem:[#allocation5 + $0x2b8] sm:$0xff]
    %v176 = vld [vmem:[#allocation5 + $0x2c0] sm:$0xff]
    %v177 = vld [vmem:[#allocation5 + $0x2c8] sm:$0xff]
    %v178 = vld [vmem:[#allocation5 + $0x2d0] sm:$0xff]
    %v179 = vld [vmem:[#allocation5 + $0x2d8] sm:$0xff]
    %v180 = vld [vmem:[#allocation5 + $0x2e0] sm:$0xff]
    %v181 = vld [vmem:[#allocation5 + $0x2e8] sm:$0xff]
    %v182 = vld [vmem:[#allocation5 + $0x2f0] sm:$0xff]
    %v183 = vld [vmem:[#allocation5 + $0x2f8] sm:$0xff]
    %v184 = vld [vmem:[%s2] sm:$0x7]
    %v186 = vlaneseq
    %v187 = vshrl.u32 %v186, 7
    %v188 = vsub.s32 0, %v187
    %v189 = vrot.slane %v184, %v188
    %v190 = vlaneseq
    %v191 = vshrl.u32 %v190, 7
    %v192 = vsub.s32 1, %v191
    %v193 = vrot.slane %v184, %v192
    %v194 = vlaneseq
    %v195 = vshrl.u32 %v194, 7
    %v196 = vsub.s32 2, %v195
    %v197 = vrot.slane %v184, %v196
    %201 = vmatprep.subr.mxu0 %v134
    %202 = vmatpush1.msra.mxu0 %v133
    %203 = vmatprep.subr.mxu0 %v131
    %204 = vmatpush1.msra.mxu0 %v130
    %205 = vmatprep.subr.mxu0 %v128
    %206 = vmatpush1.msra.mxu0 %v127
    %207 = vmatprep.subr.mxu0 %v125
    %208 = vmatpush1.msra.mxu0 %v124
    %209 = vmatprep.subr.mxu0 %v122
    %210 = vmatpush1.msra.mxu0 %v121
    %211 = vmatprep.subr.mxu0 %v119
    %212 = vmatpush1.msra.mxu0 %v118
    %213 = vmatprep.subr.mxu0 %v116
    %214 = vmatpush1.msra.mxu0 %v115
    %215 = vmatprep.subr.mxu0 %v113
    %216 = vmatpush1.msra.mxu0 %v112
    %217 = vmatprep.subr.mxu0 %v110
    %218 = vmatpush1.msra.mxu0 %v109
    %219 = vmatprep.subr.mxu0 %v107
    %220 = vmatpush1.msra.mxu0 %v106
    %221 = vmatprep.subr.mxu0 %v104
    %222 = vmatpush1.msra.mxu0 %v103
    %223 = vmatprep.subr.mxu0 %v101
    %224 = vmatpush1.msra.mxu0 %v100
    %225 = vmatprep.subr.mxu0 %v98
    %226 = vmatpush1.msra.mxu0 %v97
    %227 = vmatprep.subr.mxu0 %v95
    %228 = vmatpush1.msra.mxu0 %v94
    %229 = vmatprep.subr.mxu0 %v92
    %230 = vmatpush1.msra.mxu0 %v91
    %231 = vmatprep.subr.mxu0 %v89
    %232 = vmatpush1.msra.mxu0 %v88
    %233 = vmatprep.subr.mxu0 %v182
    %234 = vmatpush2.msra.mxu0 %v181
    %235 = vmatprep.subr.mxu0 %v179
    %236 = vmatpush2.msra.mxu0 %v178
    %237 = vmatprep.subr.mxu0 %v176
    %238 = vmatpush2.msra.mxu0 %v175
    %239 = vmatprep.subr.mxu0 %v173
    %240 = vmatpush2.msra.mxu0 %v172
    %241 = vmatprep.subr.mxu0 %v170
    %242 = vmatpush2.msra.mxu0 %v169
    %243 = vmatprep.subr.mxu0 %v167
    %244 = vmatpush2.msra.mxu0 %v166
    %245 = vmatprep.subr.mxu0 %v164
    %246 = vmatpush2.msra.mxu0 %v163
    %247 = vmatprep.subr.mxu0 %v161
    %248 = vmatpush2.msra.mxu0 %v160
    %249 = vmatprep.subr.mxu0 %v158
    %250 = vmatpush2.msra.mxu0 %v157
    %251 = vmatprep.subr.mxu0 %v155
    %252 = vmatpush2.msra.mxu0 %v154
    %253 = vmatprep.subr.mxu0 %v152
    %254 = vmatpush2.msra.mxu0 %v151
    %255 = vmatprep.subr.mxu0 %v149
    %256 = vmatpush2.msra.mxu0 %v148
    %257 = vmatprep.subr.mxu0 %v146
    %258 = vmatpush2.msra.mxu0 %v145
    %259 = vmatprep.subr.mxu0 %v143
    %260 = vmatpush2.msra.mxu0 %v142
    %261 = vmatprep.subr.mxu0 %v140
    %262 = vmatpush2.msra.mxu0 %v139
    %263 = vmatprep.subr.mxu0 %v137
    %264 = vmatpush2.msra.mxu0 %v136
    %265 = vmatprep.mubr.f32.mxu0 %v87
    %266 = vmatmul.mubr.f32.gmra.mxu0 %v86
    %v267 = vpop.f32.mrf.mxu0
    %v268 = vadd.f32 %v189, %v267
    %v269 = vpop.f32.mrf.mxu0
    %v270 = vadd.f32 %v193, %v269
    %271 = vdwg.mxu0
    %272 = vmatprep.subr.mxu0 0.0
    %273 = vmatpush1.msra.mxu0 %v135
    %274 = vmatprep.subr.mxu0 0.0
    %275 = vmatpush1.msra.mxu0 %v132
    %276 = vmatprep.subr.mxu0 0.0
    %277 = vmatpush1.msra.mxu0 %v129
    %278 = vmatprep.subr.mxu0 0.0
    %279 = vmatpush1.msra.mxu0 %v126
    %280 = vmatprep.subr.mxu0 0.0
    %281 = vmatpush1.msra.mxu0 %v123
    %282 = vmatprep.subr.mxu0 0.0
    %283 = vmatpush1.msra.mxu0 %v120
    %284 = vmatprep.subr.mxu0 0.0
    %285 = vmatpush1.msra.mxu0 %v117
    %286 = vmatprep.subr.mxu0 0.0
    %287 = vmatpush1.msra.mxu0 %v114
    %288 = vmatprep.subr.mxu0 0.0
    %289 = vmatpush1.msra.mxu0 %v111
    %290 = vmatprep.subr.mxu0 0.0
    %291 = vmatpush1.msra.mxu0 %v108
    %292 = vmatprep.subr.mxu0 0.0
    %293 = vmatpush1.msra.mxu0 %v105
    %294 = vmatprep.subr.mxu0 0.0
    %295 = vmatpush1.msra.mxu0 %v102
    %296 = vmatprep.subr.mxu0 0.0
    %297 = vmatpush1.msra.mxu0 %v99
    %298 = vmatprep.subr.mxu0 0.0
    %299 = vmatpush1.msra.mxu0 %v96
    %300 = vmatprep.subr.mxu0 0.0
    %301 = vmatpush1.msra.mxu0 %v93
    %302 = vmatprep.subr.mxu0 0.0
    %303 = vmatpush1.msra.mxu0 %v90
    %304 = vmatprep.subr.mxu0 0.0
    %305 = vmatpush2.msra.mxu0 %v183
    %306 = vmatprep.subr.mxu0 0.0
    %307 = vmatpush2.msra.mxu0 %v180
    %308 = vmatprep.subr.mxu0 0.0
    %309 = vmatpush2.msra.mxu0 %v177
    %310 = vmatprep.subr.mxu0 0.0
    %311 = vmatpush2.msra.mxu0 %v174
    %312 = vmatprep.subr.mxu0 0.0
    %313 = vmatpush2.msra.mxu0 %v171
    %314 = vmatprep.subr.mxu0 0.0
    %315 = vmatpush2.msra.mxu0 %v168
    %316 = vmatprep.subr.mxu0 0.0
    %317 = vmatpush2.msra.mxu0 %v165
    %318 = vmatprep.subr.mxu0 0.0
    %319 = vmatpush2.msra.mxu0 %v162
    %320 = vmatprep.subr.mxu0 0.0
    %321 = vmatpush2.msra.mxu0 %v159
    %322 = vmatprep.subr.mxu0 0.0
    %323 = vmatpush2.msra.mxu0 %v156
    %324 = vmatprep.subr.mxu0 0.0
    %325 = vmatpush2.msra.mxu0 %v153
    %326 = vmatprep.subr.mxu0 0.0
    %327 = vmatpush2.msra.mxu0 %v150
    %328 = vmatprep.subr.mxu0 0.0
    %329 = vmatpush2.msra.mxu0 %v147
    %330 = vmatprep.subr.mxu0 0.0
    %331 = vmatpush2.msra.mxu0 %v144
    %332 = vmatprep.subr.mxu0 0.0
    %333 = vmatpush2.msra.mxu0 %v141
    %334 = vmatprep.subr.mxu0 0.0
    %335 = vmatpush2.msra.mxu0 %v138
    %336 = vmatprep.mubr.f32.mxu0 %v87
    %337 = vmatmul.mubr.f32.gmra.mxu0 %v86
    %v338 = vpop.f32.mrf.mxu0
    %v339 = vadd.f32 %v197, %v338
    %v340 = vpop.f32.mrf.mxu0
    %341 = vdwg.mxu0
    %342 = vst [vmem:[#allocation10] sm:$0xff] %v268
    %343 = vst [vmem:[#allocation10 + $0x8] sm:$0xff] %v270
    %344 = vst [vmem:[#allocation10 + $0x10] sm:$0xff] %v339
    %v345 = vmax.f32 %v268, 0.0
    %v346 = vmax.f32 %v270, 0.0
    %v347 = vmax.f32 %v339, 0.0
    %v348 = vld [vmem:[#allocation7] sm:$0xff]
    %v349 = vld [vmem:[#allocation7 + $0x8] sm:$0xff]
    %v350 = vld [vmem:[#allocation7 + $0x10] sm:$0xff]
    %v351 = vld [vmem:[#allocation7 + $0x18] sm:$0xff]
    %v352 = vld [vmem:[#allocation7 + $0x20] sm:$0xff]
    %v353 = vld [vmem:[#allocation7 + $0x28] sm:$0xff]
    %v354 = vld [vmem:[#allocation7 + $0x30] sm:$0xff]
    %v355 = vld [vmem:[#allocation7 + $0x38] sm:$0xff]
    %v356 = vld [vmem:[#allocation7 + $0x40] sm:$0xff]
    %v357 = vld [vmem:[#allocation7 + $0x48] sm:$0xff]
    %v358 = vld [vmem:[#allocation7 + $0x50] sm:$0xff]
    %v359 = vld [vmem:[#allocation7 + $0x58] sm:$0xff]
    %v360 = vld [vmem:[#allocation7 + $0x60] sm:$0xff]
    %v361 = vld [vmem:[#allocation7 + $0x68] sm:$0xff]
    %v362 = vld [vmem:[#allocation7 + $0x70] sm:$0xff]
    %v363 = vld [vmem:[#allocation7 + $0x78] sm:$0xff]
    %v364 = vld [vmem:[#allocation7 + $0x80] sm:$0xff]
    %v365 = vld [vmem:[#allocation7 + $0x88] sm:$0xff]
    %v366 = vld [vmem:[#allocation7 + $0x90] sm:$0xff]
    %v367 = vld [vmem:[#allocation7 + $0x98] sm:$0xff]
    %v368 = vld [vmem:[#allocation7 + $0xa0] sm:$0xff]
    %v369 = vld [vmem:[#allocation7 + $0xa8] sm:$0xff]
    %v370 = vld [vmem:[#allocation7 + $0xb0] sm:$0xff]
    %v371 = vld [vmem:[#allocation7 + $0xb8] sm:$0xff]
    %v372 = vld [vmem:[#allocation7 + $0xc0] sm:$0xff]
    %v373 = vld [vmem:[#allocation7 + $0xc8] sm:$0xff]
    %v374 = vld [vmem:[#allocation7 + $0xd0] sm:$0xff]
    %v375 = vld [vmem:[#allocation7 + $0xd8] sm:$0xff]
    %v376 = vld [vmem:[#allocation7 + $0xe0] sm:$0xff]
    %v377 = vld [vmem:[#allocation7 + $0xe8] sm:$0xff]
    %v378 = vld [vmem:[#allocation7 + $0xf0] sm:$0xff]
    %v379 = vld [vmem:[#allocation7 + $0xf8] sm:$0xff]
    %v380 = vld [vmem:[#allocation7 + $0x100] sm:$0xff]
    %v381 = vld [vmem:[#allocation7 + $0x108] sm:$0xff]
    %v382 = vld [vmem:[#allocation7 + $0x110] sm:$0xff]
    %v383 = vld [vmem:[#allocation7 + $0x118] sm:$0xff]
    %v384 = vld [vmem:[#allocation7 + $0x120] sm:$0xff]
    %v385 = vld [vmem:[#allocation7 + $0x128] sm:$0xff]
    %v386 = vld [vmem:[#allocation7 + $0x130] sm:$0xff]
    %v387 = vld [vmem:[#allocation7 + $0x138] sm:$0xff]
    %v388 = vld [vmem:[#allocation7 + $0x140] sm:$0xff]
    %v389 = vld [vmem:[#allocation7 + $0x148] sm:$0xff]
    %v390 = vld [vmem:[#allocation7 + $0x150] sm:$0xff]
    %v391 = vld [vmem:[#allocation7 + $0x158] sm:$0xff]
    %v392 = vld [vmem:[#allocation7 + $0x160] sm:$0xff]
    %v393 = vld [vmem:[#allocation7 + $0x168] sm:$0xff]
    %v394 = vld [vmem:[#allocation7 + $0x170] sm:$0xff]
    %v395 = vld [vmem:[#allocation7 + $0x178] sm:$0xff]
    %v396 = vld [vmem:[%s4] sm:$0x1]
    %v398 = vlaneseq
    %v399 = vshrl.u32 %v398, 7
    %v400 = vsub.s32 0, %v399
    %v401 = vrot.slane %v396, %v400
    %403 = vmatprep.subr.mxu0 0.0
    %404 = vmatpush1.msra.mxu0 %v363
    %405 = vmatprep.subr.mxu0 0.0
    %406 = vmatpush1.msra.mxu0 %v362
    %407 = vmatprep.subr.mxu0 0.0
    %408 = vmatpush1.msra.mxu0 %v361
    %409 = vmatprep.subr.mxu0 0.0
    %410 = vmatpush1.msra.mxu0 %v360
    %411 = vmatprep.subr.mxu0 0.0
    %412 = vmatpush1.msra.mxu0 %v359
    %413 = vmatprep.subr.mxu0 0.0
    %414 = vmatpush1.msra.mxu0 %v358
    %415 = vmatprep.subr.mxu0 0.0
    %416 = vmatpush1.msra.mxu0 %v357
    %417 = vmatprep.subr.mxu0 0.0
    %418 = vmatpush1.msra.mxu0 %v356
    %419 = vmatprep.subr.mxu0 0.0
    %420 = vmatpush1.msra.mxu0 %v355
    %421 = vmatprep.subr.mxu0 0.0
    %422 = vmatpush1.msra.mxu0 %v354
    %423 = vmatprep.subr.mxu0 0.0
    %424 = vmatpush1.msra.mxu0 %v353
    %425 = vmatprep.subr.mxu0 0.0
    %426 = vmatpush1.msra.mxu0 %v352
    %427 = vmatprep.subr.mxu0 0.0
    %428 = vmatpush1.msra.mxu0 %v351
    %429 = vmatprep.subr.mxu0 0.0
    %430 = vmatpush1.msra.mxu0 %v350
    %431 = vmatprep.subr.mxu0 0.0
    %432 = vmatpush1.msra.mxu0 %v349
    %433 = vmatprep.subr.mxu0 0.0
    %434 = vmatpush1.msra.mxu0 %v348
    %435 = vmatprep.subr.mxu0 0.0
    %436 = vmatpush2.msra.mxu0 %v379
    %437 = vmatprep.subr.mxu0 0.0
    %438 = vmatpush2.msra.mxu0 %v378
    %439 = vmatprep.subr.mxu0 0.0
    %440 = vmatpush2.msra.mxu0 %v377
    %441 = vmatprep.subr.mxu0 0.0
    %442 = vmatpush2.msra.mxu0 %v376
    %443 = vmatprep.subr.mxu0 0.0
    %444 = vmatpush2.msra.mxu0 %v375
    %445 = vmatprep.subr.mxu0 0.0
    %446 = vmatpush2.msra.mxu0 %v374
    %447 = vmatprep.subr.mxu0 0.0
    %448 = vmatpush2.msra.mxu0 %v373
    %449 = vmatprep.subr.mxu0 0.0
    %450 = vmatpush2.msra.mxu0 %v372
    %451 = vmatprep.subr.mxu0 0.0
    %452 = vmatpush2.msra.mxu0 %v371
    %453 = vmatprep.subr.mxu0 0.0
    %454 = vmatpush2.msra.mxu0 %v370
    %455 = vmatprep.subr.mxu0 0.0
    %456 = vmatpush2.msra.mxu0 %v369
    %457 = vmatprep.subr.mxu0 0.0
    %458 = vmatpush2.msra.mxu0 %v368
    %459 = vmatprep.subr.mxu0 0.0
    %460 = vmatpush2.msra.mxu0 %v367
    %461 = vmatprep.subr.mxu0 0.0
    %462 = vmatpush2.msra.mxu0 %v366
    %463 = vmatprep.subr.mxu0 0.0
    %464 = vmatpush2.msra.mxu0 %v365
    %465 = vmatprep.subr.mxu0 0.0
    %466 = vmatpush2.msra.mxu0 %v364
    %467 = vmatprep.mubr.f32.mxu0 %v346
    %468 = vmatmul.mubr.f32.gmra.mxu0 %v345
    %v469 = vpop.f32.mrf.mxu0
    %v470 = vadd.f32 %v401, %v469
    %v471 = vpop.f32.mrf.mxu0
    %472 = vdwg.mxu0
    %473 = vmatprep.subr.mxu0 0.0
    %474 = vmatpush1.msra.mxu0 %v395
    %475 = vmatprep.subr.mxu0 0.0
    %476 = vmatpush1.msra.mxu0 %v394
    %477 = vmatprep.subr.mxu0 0.0
    %478 = vmatpush1.msra.mxu0 %v393
    %479 = vmatprep.subr.mxu0 0.0
    %480 = vmatpush1.msra.mxu0 %v392
    %481 = vmatprep.subr.mxu0 0.0
    %482 = vmatpush1.msra.mxu0 %v391
    %483 = vmatprep.subr.mxu0 0.0
    %484 = vmatpush1.msra.mxu0 %v390
    %485 = vmatprep.subr.mxu0 0.0
    %486 = vmatpush1.msra.mxu0 %v389
    %487 = vmatprep.subr.mxu0 0.0
    %488 = vmatpush1.msra.mxu0 %v388
    %489 = vmatprep.subr.mxu0 0.0
    %490 = vmatpush1.msra.mxu0 %v387
    %491 = vmatprep.subr.mxu0 0.0
    %492 = vmatpush1.msra.mxu0 %v386
    %493 = vmatprep.subr.mxu0 0.0
    %494 = vmatpush1.msra.mxu0 %v385
    %495 = vmatprep.subr.mxu0 0.0
    %496 = vmatpush1.msra.mxu0 %v384
    %497 = vmatprep.subr.mxu0 0.0
    %498 = vmatpush1.msra.mxu0 %v383
    %499 = vmatprep.subr.mxu0 0.0
    %500 = vmatpush1.msra.mxu0 %v382
    %501 = vmatprep.subr.mxu0 0.0
    %502 = vmatpush1.msra.mxu0 %v381
    %503 = vmatprep.subr.mxu0 0.0
    %504 = vmatpush1.msra.mxu0 %v380
    %505 = vmatprep.subr.mxu0 0.0
    %506 = vmatpush2.msra.mxu0 0.0
    %507 = vmatprep.subr.mxu0 0.0
    %508 = vmatpush2.msra.mxu0 0.0
    %509 = vmatprep.subr.mxu0 0.0
    %510 = vmatpush2.msra.mxu0 0.0
    %511 = vmatprep.subr.mxu0 0.0
    %512 = vmatpush2.msra.mxu0 0.0
    %513 = vmatprep.subr.mxu0 0.0
    %514 = vmatpush2.msra.mxu0 0.0
    %515 = vmatprep.subr.mxu0 0.0
    %516 = vmatpush2.msra.mxu0 0.0
    %517 = vmatprep.subr.mxu0 0.0
    %518 = vmatpush2.msra.mxu0 0.0
    %519 = vmatprep.subr.mxu0 0.0
    %520 = vmatpush2.msra.mxu0 0.0
    %521 = vmatprep.subr.mxu0 0.0
    %522 = vmatpush2.msra.mxu0 0.0
    %523 = vmatprep.subr.mxu0 0.0
    %524 = vmatpush2.msra.mxu0 0.0
    %525 = vmatprep.subr.mxu0 0.0
    %526 = vmatpush2.msra.mxu0 0.0
    %527 = vmatprep.subr.mxu0 0.0
    %528 = vmatpush2.msra.mxu0 0.0
    %529 = vmatprep.subr.mxu0 0.0
    %530 = vmatpush2.msra.mxu0 0.0
    %531 = vmatprep.subr.mxu0 0.0
    %532 = vmatpush2.msra.mxu0 0.0
    %533 = vmatprep.subr.mxu0 0.0
    %534 = vmatpush2.msra.mxu0 0.0
    %535 = vmatprep.subr.mxu0 0.0
    %536 = vmatpush2.msra.mxu0 0.0
    %537 = vmatprep.mubr.f32.mxu0 0.0
    %538 = vmatmul.mubr.f32.gmra.mxu0 %v347
    %v539 = vpop.f32.mrf.mxu0
    %v540 = vadd.f32 %v470, %v539
    %v541 = vpop.f32.mrf.mxu0
    %542 = vdwg.mxu0
    %543 = vst [vmem:[#allocation11] sm:$0xff] %v540
    %v544 = vmax.f32 %v540, 0.0
    %v545 = vld [vmem:[#allocation8] sm:$0xff]
    %v546 = vld [vmem:[#allocation8 + $0x8] sm:$0xff]
    %v547 = vld [vmem:[#allocation8 + $0x10] sm:$0xff]
    %v548 = vld [vmem:[#allocation8 + $0x18] sm:$0xff]
    %v549 = vld [vmem:[#allocation8 + $0x20] sm:$0xff]
    %v550 = vld [vmem:[#allocation8 + $0x28] sm:$0xff]
    %v551 = vld [vmem:[#allocation8 + $0x30] sm:$0xff]
    %v552 = vld [vmem:[#allocation8 + $0x38] sm:$0xff]
    %v553 = vld [vmem:[#allocation8 + $0x40] sm:$0xff]
    %v554 = vld [vmem:[#allocation8 + $0x48] sm:$0xff]
    %v555 = vld [vmem:[#allocation8 + $0x50] sm:$0xff]
    %v556 = vld [vmem:[#allocation8 + $0x58] sm:$0xff]
    %v557 = vld [vmem:[#allocation8 + $0x60] sm:$0xff]
    %v558 = vld [vmem:[#allocation8 + $0x68] sm:$0xff]
    %v559 = vld [vmem:[#allocation8 + $0x70] sm:$0xff]
    %v560 = vld [vmem:[#allocation8 + $0x78] sm:$0xff]
    %v561 = vld [vmem:[%s6] sm:$0x1]
    %v563 = vlaneseq
    %v564 = vshrl.u32 %v563, 7
    %v565 = vsub.s32 0, %v564
    %v566 = vrot.slane %v561, %v565
    %568 = vmatprep.subr.mxu0 0.0
    %569 = vmatpush1.msra.mxu0 %v560
    %570 = vmatprep.subr.mxu0 0.0
    %571 = vmatpush1.msra.mxu0 %v559
    %572 = vmatprep.subr.mxu0 0.0
    %573 = vmatpush1.msra.mxu0 %v558
    %574 = vmatprep.subr.mxu0 0.0
    %575 = vmatpush1.msra.mxu0 %v557
    %576 = vmatprep.subr.mxu0 0.0
    %577 = vmatpush1.msra.mxu0 %v556
    %578 = vmatprep.subr.mxu0 0.0
    %579 = vmatpush1.msra.mxu0 %v555
    %580 = vmatprep.subr.mxu0 0.0
    %581 = vmatpush1.msra.mxu0 %v554
    %582 = vmatprep.subr.mxu0 0.0
    %583 = vmatpush1.msra.mxu0 %v553
    %584 = vmatprep.subr.mxu0 0.0
    %585 = vmatpush1.msra.mxu0 %v552
    %586 = vmatprep.subr.mxu0 0.0
    %587 = vmatpush1.msra.mxu0 %v551
    %588 = vmatprep.subr.mxu0 0.0
    %589 = vmatpush1.msra.mxu0 %v550
    %590 = vmatprep.subr.mxu0 0.0
    %591 = vmatpush1.msra.mxu0 %v549
    %592 = vmatprep.subr.mxu0 0.0
    %593 = vmatpush1.msra.mxu0 %v548
    %594 = vmatprep.subr.mxu0 0.0
    %595 = vmatpush1.msra.mxu0 %v547
    %596 = vmatprep.subr.mxu0 0.0
    %597 = vmatpush1.msra.mxu0 %v546
    %598 = vmatprep.subr.mxu0 0.0
    %599 = vmatpush1.msra.mxu0 %v545
    %600 = vmatprep.subr.mxu0 0.0
    %601 = vmatpush2.msra.mxu0 0.0
    %602 = vmatprep.subr.mxu0 0.0
    %603 = vmatpush2.msra.mxu0 0.0
    %604 = vmatprep.subr.mxu0 0.0
    %605 = vmatpush2.msra.mxu0 0.0
    %606 = vmatprep.subr.mxu0 0.0
    %607 = vmatpush2.msra.mxu0 0.0
    %608 = vmatprep.subr.mxu0 0.0
    %609 = vmatpush2.msra.mxu0 0.0
    %610 = vmatprep.subr.mxu0 0.0
    %611 = vmatpush2.msra.mxu0 0.0
    %612 = vmatprep.subr.mxu0 0.0
    %613 = vmatpush2.msra.mxu0 0.0
    %614 = vmatprep.subr.mxu0 0.0
    %615 = vmatpush2.msra.mxu0 0.0
    %616 = vmatprep.subr.mxu0 0.0
    %617 = vmatpush2.msra.mxu0 0.0
    %618 = vmatprep.subr.mxu0 0.0
    %619 = vmatpush2.msra.mxu0 0.0
    %620 = vmatprep.subr.mxu0 0.0
    %621 = vmatpush2.msra.mxu0 0.0
    %622 = vmatprep.subr.mxu0 0.0
    %623 = vmatpush2.msra.mxu0 0.0
    %624 = vmatprep.subr.mxu0 0.0
    %625 = vmatpush2.msra.mxu0 0.0
    %626 = vmatprep.subr.mxu0 0.0
    %627 = vmatpush2.msra.mxu0 0.0
    %628 = vmatprep.subr.mxu0 0.0
    %629 = vmatpush2.msra.mxu0 0.0
    %630 = vmatprep.subr.mxu0 0.0
    %631 = vmatpush2.msra.mxu0 0.0
    %632 = vmatprep.mubr.f32.mxu0 0.0
    %633 = vmatmul.mubr.f32.gmra.mxu0 %v544
    %v634 = vpop.f32.mrf.mxu0
    %v635 = vadd.f32 %v566, %v634
    %v636 = vpop.f32.mrf.mxu0
    %637 = vdwg.mxu0
    %638 = vst [vmem:[#allocation13] sm:$0xff] %v635
    %v639 = vlaneseq
    %v640 = vand.u32 %v639, 127
    %vm641 = vcmp.lt.s32.totalorder %v640, 10
    %v642 = vsel %vm641, %v635, -1e+30
    %643 = vmax.xlane.f32.xlu0 %v642
    %v644 = vpop.xlane.xlu0 %643
    %v645 = vsub.f32 %v642, %v644
    %v646 = vmul.f32 %v645, 1.442695
    %v647 = vpow.pop %v646
    %648 = vadd.xlane.f32.xlu0 %v647
    %v649 = vpop.xlane.xlu0 %648
    %v650 = vlog2.pop %v649
    %v651 = vmul.f32 %v650, 0.6931472
    %v652 = vsub.f32 %v645, %v651
    %653 = vst [vmem:[#allocation14] sm:$0xff] %v652
    // Predicated region
    $region46: #{tpu_custom_call.1} parent=1 // pred_check
      _
    $region47: #{tpu_custom_call.1} parent=1 // pred_check_branch
      %655 = sbr.rel (0) target = $region49
    $region48: #{tpu_custom_call.1} parent=1 // pred_region
      %s657 = ssub.s32 384, 384
      %658 = vsyncadd [#allocation4], %s657
      %s660 = sshll.u32 [#allocation10], 4
      %s661 = int_to_ptr.vmem [resolvable:$true] %s660
      %663 = dma.vmem_to_hbm [thread:$0]  %s661, 384, %s7, [#allocation4]
    $region49: #{tpu_custom_call.1} parent=1 // pred_fallthru
      _
    // Predicated region
    $region50: #{tpu_custom_call.1} parent=1 // pred_check
      _
    $region51: #{tpu_custom_call.1} parent=1 // pred_check_branch
      %665 = sbr.rel (0) target = $region53
    $region52: #{tpu_custom_call.1} parent=1 // pred_region
      %s667 = ssub.s32 128, 128
      %668 = vsyncadd [#allocation12], %s667
      %s670 = sshll.u32 [#allocation11], 4
      %s671 = int_to_ptr.vmem [resolvable:$true] %s670
      %673 = dma.vmem_to_hbm [thread:$0]  %s671, 128, %s8, [#allocation12]
    $region53: #{tpu_custom_call.1} parent=1 // pred_fallthru
      _
    // Predicated region
    $region54: #{tpu_custom_call.1} parent=1 // pred_check
      _
    $region55: #{tpu_custom_call.1} parent=1 // pred_check_branch
      %675 = sbr.rel (0) target = $region57
    $region56: #{tpu_custom_call.1} parent=1 // pred_region
      %s677 = ssub.s32 128, 128
      %678 = vsyncadd [#allocation12], %s677
      %s680 = sshll.u32 [#allocation13], 4
      %s681 = int_to_ptr.vmem [resolvable:$true] %s680
      %683 = dma.vmem_to_hbm [thread:$0]  %s681, 128, %s9, [#allocation12]
    $region57: #{tpu_custom_call.1} parent=1 // pred_fallthru
      _
    // Predicated region
    $region58: #{tpu_custom_call.1} parent=1 // pred_check
      _
    $region59: #{tpu_custom_call.1} parent=1 // pred_check_branch
      %685 = sbr.rel (0) target = $region61
    $region60: #{tpu_custom_call.1} parent=1 // pred_region
      %s687 = ssub.s32 128, 128
      %688 = vsyncadd [#allocation15], %s687
      %s690 = sshll.u32 [#allocation14], 4
      %s691 = int_to_ptr.vmem [resolvable:$true] %s690
      %693 = dma.vmem_to_hbm [thread:$0]  %s691, 128, %s10, [#allocation15]
    $region61: #{tpu_custom_call.1} parent=1 // pred_fallthru
      _
    // Predicated region
    $region62: #{tpu_custom_call.1} parent=1 // pred_check
      _
    $region63: #{tpu_custom_call.1} parent=1 // pred_check_branch
      %695 = sbr.rel (0) target = $region65
    $region64: #{tpu_custom_call.1} parent=1 // pred_region
      %696 = dma.done [#allocation4], 384
    $region65: #{tpu_custom_call.1} parent=1 // pred_fallthru
      _
    // Predicated region
    $region66: #{tpu_custom_call.1} parent=1 // pred_check
      _
    $region67: #{tpu_custom_call.1} parent=1 // pred_check_branch
      %698 = sbr.rel (0) target = $region69
    $region68: #{tpu_custom_call.1} parent=1 // pred_region
      %699 = dma.done [#allocation12], 128
    $region69: #{tpu_custom_call.1} parent=1 // pred_fallthru
      _
    // Predicated region
    $region70: #{tpu_custom_call.1} parent=1 // pred_check
      _
    $region71: #{tpu_custom_call.1} parent=1 // pred_check_branch
      %701 = sbr.rel (0) target = $region73
    $region72: #{tpu_custom_call.1} parent=1 // pred_region
      %702 = dma.done [#allocation12], 128
    $region73: #{tpu_custom_call.1} parent=1 // pred_fallthru
      _
    // Predicated region
    $region74: #{tpu_custom_call.1} parent=1 // pred_check
      _
    $region75: #{tpu_custom_call.1} parent=1 // pred_check_branch
      %704 = sbr.rel (0) target = $region77
    $region76: #{tpu_custom_call.1} parent=1 // pred_region
      %705 = dma.done [#allocation15], 128
    $region77: #{tpu_custom_call.1} parent=1 // pred_fallthru
      _
    %706 = vsyncpa [#allocation3], 1
    %707 = vsyncpa [#allocation6], 1
    %708 = vsyncpa [#allocation9], 1
    %709 = vsyncpa [#allocation4], 1
    %710 = vsyncpa [#allocation12], 1
    %711 = vsyncpa [#allocation15], 1

</llo_original>
